<compile_context>
chip_gen: v7x
topology: tpu7x:2x2x1
jax: 0.10.0
libtpu: 0.0.40
codegen_flags: <defaults>
</compile_context>

<pallas_src>
import functools

import jax
import jax.numpy as jnp
from jax.experimental import pallas as pl
from jax.experimental.pallas import tpu as pltpu


def _pool_kernel(x_ref, mx_ref, av_ref, mx_acc, sum_acc, *, L, TL, mask_tail):
    """Process one (TR, TL) tile of the flattened (N*C, L) input.

    Grid = (row_blocks, length_blocks); the length axis is the reduction axis.
    """
    l = pl.program_id(1)

    @pl.when(l == 0)
    def _init():
        mx_acc[...] = jnp.full(mx_acc.shape, -jnp.inf, dtype=mx_acc.dtype)
        sum_acc[...] = jnp.zeros(sum_acc.shape, dtype=sum_acc.dtype)

    x = x_ref[...]                              # (TR, TL), native dtype

    if mask_tail:
        lane = jax.lax.broadcasted_iota(jnp.int32, x.shape, 1)
        valid = L - l * TL                      # >= TL for every step but the last
        keep = lane < valid
        x_max = jnp.where(keep, x, jnp.array(-jnp.inf, dtype=x.dtype))
        x_sum = jnp.where(keep, x, jnp.array(0, dtype=x.dtype))
    else:
        x_max = x
        x_sum = x

    # Max in the native dtype; sum accumulated in f32 (no full-tile f32 copy).
    mx_acc[...] = jnp.maximum(
        mx_acc[...],
        jnp.max(x_max, axis=-1, keepdims=True).astype(jnp.float32))
    sum_acc[...] = sum_acc[...] + jnp.sum(
        x_sum, axis=-1, keepdims=True, dtype=jnp.float32)

    @pl.when(l == pl.num_programs(1) - 1)
    def _finalize():
        mx_ref[...] = mx_acc[...].astype(mx_ref.dtype)
        av_ref[...] = (sum_acc[...] * (1.0 / L)).astype(av_ref.dtype)


def _choose_tiles(R, L, itemsize, block_bytes):
    """Pick (TR, TL) with TR*TL*itemsize <= block_bytes, honoring (8,128) rules."""
    row_bytes = L * itemsize
    if 8 * row_bytes <= block_bytes:
        # Full length axis fits in one block: tile rows only (single L step).
        if R <= 8:
            return R, L
        max_tr = (block_bytes // row_bytes) // 8 * 8
        tr = min(max_tr, (R // 8) * 8)
        # Prefer >= 2 row blocks when everything would fit in one, so the
        # parallel grid axis can be sharded across v7x's two TensorCores.
        if tr >= R and R >= 16:
            tr = max(8, ((R // 2) // 8) * 8)
        return max(tr, 8), L
    # Very long rows: tile the length axis as well and accumulate across it.
    tr = R if R < 8 else 8
    tl = max(128, (block_bytes // (tr * itemsize)) // 128 * 128)
    if tl >= L:
        tl = L
    return tr, tl


def adaptive_concat_pool1d(x, *, block_bytes=4 * 1024 * 1024):
    """x: (N, C, L) -> (N, 2C, 1), matching AdaptiveConcatPool1d(size=1)."""
    N, C, L = x.shape
    R = N * C
    x2 = x.reshape(R, L)                        # free, contiguous 2-D view

    TR, TL = _choose_tiles(R, L, x.dtype.itemsize, block_bytes)
    grid_rows = pl.cdiv(R, TR)
    grid_len = pl.cdiv(L, TL)
    mask_tail = (L % TL) != 0

    kernel = functools.partial(_pool_kernel, L=L, TL=TL, mask_tail=mask_tail)

    mx, av = pl.pallas_call(
        kernel,
        out_shape=(jax.ShapeDtypeStruct((R, 1), x.dtype),
                   jax.ShapeDtypeStruct((R, 1), x.dtype)),
        grid_spec=pltpu.PrefetchScalarGridSpec(
            num_scalar_prefetch=0,
            grid=(grid_rows, grid_len),
            in_specs=[pl.BlockSpec((TR, TL), lambda i, l: (i, l))],
            out_specs=[pl.BlockSpec((TR, 1), lambda i, l: (i, 0)),
                       pl.BlockSpec((TR, 1), lambda i, l: (i, 0))],
            scratch_shapes=[pltpu.VMEM((TR, 1), jnp.float32),
                            pltpu.VMEM((TR, 1), jnp.float32)]),
        compiler_params=pltpu.CompilerParams(
            dimension_semantics=("parallel", "arbitrary")),
    )(x2)

    # Assemble (N, 2C, 1): max-pooled channels first, then avg (torch.cat order).
    return jnp.concatenate([mx.reshape(N, C, 1), av.reshape(N, C, 1)], axis=1)


def _reference(x):
    return jnp.concatenate(
        [jnp.max(x, axis=-1, keepdims=True), jnp.mean(x, axis=-1, keepdims=True)],
        axis=1)


if __name__ == "__main__":
    key = jax.random.PRNGKey(0)

    # Spec-sized example: batch=2, channels=4, length=16.
    N, C, L = 2, 4, 16
    x = jax.random.normal(key, (N, C, L), dtype=jnp.float32)
    out = adaptive_concat_pool1d(x)
    jax.block_until_ready(out)
    assert out.shape == (N, 2 * C, 1), out.shape
    assert jnp.allclose(out, _reference(x), atol=1e-5, rtol=1e-5)

    # Also exercise the tiled-reduction path (partial row block + masked L tail).
    x2 = jax.random.normal(jax.random.PRNGKey(1), (3, 5, 300), dtype=jnp.float32)
    out2 = adaptive_concat_pool1d(x2, block_bytes=4096)
    jax.block_until_ready(out2)
    assert out2.shape == (3, 10, 1), out2.shape
    assert jnp.allclose(out2, _reference(x2), atol=1e-5, rtol=1e-5)

    print("KERNEL_OK")
</pallas_src>

<mosaic_0001>
module attributes {stable_mosaic.version = 11 : i64} {
  func.func @_pool_kernel(%arg0: i32, %arg1: i32, %arg2: memref<8x16xf32, #tpu.memory_space<vmem>>, %arg3: memref<8x1xf32, #tpu.memory_space<vmem>>, %arg4: memref<8x1xf32, #tpu.memory_space<vmem>>, %arg5: memref<8x1xf32, #tpu.memory_space<vmem>>, %arg6: memref<8x1xf32, #tpu.memory_space<vmem>>) attributes {dimension_semantics = [#tpu.dimension_semantics<parallel>, #tpu.dimension_semantics<arbitrary>], iteration_bounds = array<i64: 1, 1>, scalar_prefetch = 0 : i64, scratch_operands = 2 : i64, tpu.core_type = #tpu.core_type<tc>, window_params = [{transform_indices = @transform_0, window_bounds = array<i64: 8, 16>}, {transform_indices = @transform_1, window_bounds = array<i64: 8, 1>}, {transform_indices = @transform_2, window_bounds = array<i64: 8, 1>}]} {
    %c0_i32 = arith.constant 0 : i32
    %0 = arith.cmpi eq, %arg1, %c0_i32 : i32
    %1 = arith.extui %0 : i1 to i32
    %c0_i32_0 = arith.constant 0 : i32
    %2 = arith.cmpi ne, %1, %c0_i32_0 : i32
    scf.if %2 {
      %cst_13 = arith.constant 0xFF800000 : f32
      %17 = vector.broadcast %cst_13 : f32 to vector<8x1xf32>
      %c0_14 = arith.constant 0 : index
      %c0_15 = arith.constant 0 : index
      %18 = vector.load %arg5[%c0_14, %c0_15] : memref<8x1xf32, #tpu.memory_space<vmem>>, vector<8x1xf32>
      tpu.vector_store %arg5[%c0_14, %c0_15], %17 {strides = array<i32>} : memref<8x1xf32, #tpu.memory_space<vmem>>, vector<8x1xf32>,
      %cst_16 = arith.constant 0.000000e+00 : f32
      %19 = vector.broadcast %cst_16 : f32 to vector<8x1xf32>
      %c0_17 = arith.constant 0 : index
      %c0_18 = arith.constant 0 : index
      %20 = vector.load %arg6[%c0_17, %c0_18] : memref<8x1xf32, #tpu.memory_space<vmem>>, vector<8x1xf32>
      tpu.vector_store %arg6[%c0_17, %c0_18], %19 {strides = array<i32>} : memref<8x1xf32, #tpu.memory_space<vmem>>, vector<8x1xf32>,
    } else {
    }
    %c0 = arith.constant 0 : index
    %c0_1 = arith.constant 0 : index
    %3 = vector.load %arg2[%c0, %c0_1] : memref<8x16xf32, #tpu.memory_space<vmem>>, vector<8x16xf32>
    %c0_2 = arith.constant 0 : index
    %c0_3 = arith.constant 0 : index
    %4 = vector.load %arg5[%c0_2, %c0_3] : memref<8x1xf32, #tpu.memory_space<vmem>>, vector<8x1xf32>
    %cst = arith.constant dense<0xFF800000> : vector<8xf32>
    %5 = vector.multi_reduction <maximumf>, %3, %cst [1] : vector<8x16xf32> to vector<8xf32>
    %6 = vector.shape_cast %5 : vector<8xf32> to vector<8x1xf32>
    %7 = arith.maximumf %4, %6 : vector<8x1xf32>
    %c0_4 = arith.constant 0 : index
    %c0_5 = arith.constant 0 : index
    %8 = vector.load %arg5[%c0_4, %c0_5] : memref<8x1xf32, #tpu.memory_space<vmem>>, vector<8x1xf32>
    tpu.vector_store %arg5[%c0_4, %c0_5], %7 {strides = array<i32>} : memref<8x1xf32, #tpu.memory_space<vmem>>, vector<8x1xf32>,
    %c0_6 = arith.constant 0 : index
    %c0_7 = arith.constant 0 : index
    %9 = vector.load %arg6[%c0_6, %c0_7] : memref<8x1xf32, #tpu.memory_space<vmem>>, vector<8x1xf32>
    %cst_8 = arith.constant dense<0.000000e+00> : vector<8xf32>
    %10 = vector.multi_reduction <add>, %3, %cst_8 [1] : vector<8x16xf32> to vector<8xf32>
    %11 = vector.shape_cast %10 : vector<8xf32> to vector<8x1xf32>
    %12 = arith.addf %9, %11 : vector<8x1xf32>
    %c0_9 = arith.constant 0 : index
    %c0_10 = arith.constant 0 : index
    %13 = vector.load %arg6[%c0_9, %c0_10] : memref<8x1xf32, #tpu.memory_space<vmem>>, vector<8x1xf32>
    tpu.vector_store %arg6[%c0_9, %c0_10], %12 {strides = array<i32>} : memref<8x1xf32, #tpu.memory_space<vmem>>, vector<8x1xf32>,
    %c0_i32_11 = arith.constant 0 : i32
    %14 = arith.cmpi eq, %arg1, %c0_i32_11 : i32
    %15 = arith.extui %14 : i1 to i32
    %c0_i32_12 = arith.constant 0 : i32
    %16 = arith.cmpi ne, %15, %c0_i32_12 : i32
    scf.if %16 {
      %c0_13 = arith.constant 0 : index
      %c0_14 = arith.constant 0 : index
      %17 = vector.load %arg5[%c0_13, %c0_14] : memref<8x1xf32, #tpu.memory_space<vmem>>, vector<8x1xf32>
      %c0_15 = arith.constant 0 : index
      %c0_16 = arith.constant 0 : index
      %18 = vector.load %arg3[%c0_15, %c0_16] : memref<8x1xf32, #tpu.memory_space<vmem>>, vector<8x1xf32>
      tpu.vector_store %arg3[%c0_15, %c0_16], %17 {strides = array<i32>} : memref<8x1xf32, #tpu.memory_space<vmem>>, vector<8x1xf32>,
      %c0_17 = arith.constant 0 : index
      %c0_18 = arith.constant 0 : index
      %19 = vector.load %arg6[%c0_17, %c0_18] : memref<8x1xf32, #tpu.memory_space<vmem>>, vector<8x1xf32>
      %cst_19 = arith.constant 6.250000e-02 : f32
      %20 = vector.broadcast %cst_19 : f32 to vector<8x1xf32>
      %21 = arith.mulf %19, %20 : vector<8x1xf32>
      %c0_20 = arith.constant 0 : index
      %c0_21 = arith.constant 0 : index
      %22 = vector.load %arg4[%c0_20, %c0_21] : memref<8x1xf32, #tpu.memory_space<vmem>>, vector<8x1xf32>
      tpu.vector_store %arg4[%c0_20, %c0_21], %21 {strides = array<i32>} : memref<8x1xf32, #tpu.memory_space<vmem>>, vector<8x1xf32>,
    } else {
    }
    return
  }
  func.func @transform_0(%arg0: i32, %arg1: i32) -> (i32, i32) {
    %c0_i32 = arith.constant 0 : i32
    return %arg0, %arg1 : i32, i32
  }
  func.func @transform_1(%arg0: i32, %arg1: i32) -> (i32, i32) {
    %c0_i32 = arith.constant 0 : i32
    %c0_i32_0 = arith.constant 0 : i32
    return %arg0, %c0_i32 : i32, i32
  }
  func.func @transform_2(%arg0: i32, %arg1: i32) -> (i32, i32) {
    %c0_i32 = arith.constant 0 : i32
    %c0_i32_0 = arith.constant 0 : i32
    return %arg0, %c0_i32 : i32, i32
  }
}

</mosaic_0001>

<llo_original>
// kernel: tpu_custom_call.1
$region0: #{tpu_custom_call.1}
  #allocation0 [shape = 'u32[]', space=smem, size = 0x4, offset = 0x4, fixed_abs, tag = 'smem constant byte address 0x4 - core index']
  #allocation1 [shape = 'u32[144,128]{1,0:T(1,128)}', space=vmem, size = 0x12000, scoped, tag = 'internal scratch']
  #allocation2 [shape = 'f32[8,1]{1,0:T(8,128)}', space=vmem, size = 0x1000, scoped, tag = 'scratch operand']
  #allocation3 [shape = 'f32[8,1]{1,0:T(8,128)}', space=vmem, size = 0x1000, scoped, tag = 'scratch operand']
  %s0 = inlined_call_operand.hbm [shape: f32[8,16], index: 0, kind: input, shape index: {}]
  %s1 = inlined_call_operand.vmem [shape: f32[8,1], index: 1, kind: output, shape index: {0}]
  %s2 = inlined_call_operand.vmem [shape: f32[8,1], index: 2, kind: output, shape index: {1}]
  %3 = xla_tuple %s1, %s2
  %s4 = sld [smem:[#allocation0]]
  $region34: #{tpu_custom_call.1} parent=0
    _
  %s6 = ssub.s32 1, %s4
  %s7 = scalar_select 0, %s6, %s4
  $region1: #{tpu_custom_call.1} parent=0
    #allocation4 [shape = 'u8[4096]{0}', space=vmem, size = 0x1000, scoped, tag = 'input window, operand 0, single buffered']
    #allocation5 [shape = 's32[1]{0}', space=sflag, size = 0x4, scoped, tag = 'scoped memory for tpu_custom_call.1']
    %8 = vsyncpa [#allocation5], 0
    // Predicated region
    $region2: #{tpu_custom_call.1} parent=1 // pred_check
      _
    $region3: #{tpu_custom_call.1} parent=1 // pred_check_branch
      %10 = sbr.rel (0) target = $region5
    $region4: #{tpu_custom_call.1} parent=1 // pred_region
      %s12 = ssub.s32 128, 128
      %13 = vsyncadd [#allocation5], %s12
      %s15 = sshll.u32 [#allocation4], 4
      %s16 = int_to_ptr.vmem [resolvable:$true] %s15
      %18 = dma.hbm_to_vmem [thread:$0]  %s0, 128, %s16, [#allocation5]
    $region5: #{tpu_custom_call.1} parent=1 // pred_fallthru
      _
    // Predicated region
    $region6: #{tpu_custom_call.1} parent=1 // pred_check
      _
    $region7: #{tpu_custom_call.1} parent=1 // pred_check_branch
      %20 = sbr.rel (0) target = $region9
    $region8: #{tpu_custom_call.1} parent=1 // pred_region
      %21 = dma.done [#allocation5], 128
    $region9: #{tpu_custom_call.1} parent=1 // pred_fallthru
      _
    %p22 = scmp.eq.s32.totalorder 0, 0
    // Predicated region
    $region10: #{tpu_custom_call.1} parent=1 // pred_check
      %p23 = pneg %p22
    $region11: #{tpu_custom_call.1} parent=1 // pred_check_branch
      %25 = sbr.rel (%p23) target = $region13
    $region12: #{tpu_custom_call.1} parent=1 // pred_region
      %vm26 = vcmask 7168
      %27 = vst.msk [vmem:[#allocation2] sm:$0xff] %vm26, -inf
      %28 = vst.msk [vmem:[#allocation3] sm:$0xff] %vm26, 0.0
    $region13: #{tpu_custom_call.1} parent=1 // pred_fallthru
      _
    %v29 = vld [vmem:[#allocation4] sm:$0xff]
    %v30 = vld [vmem:[#allocation2] sm:$0xff]
    %vm31 = vcmask 130048
    %v32 = vsel %vm31, %v29, -inf
    %33 = vmax.xlane.f32.xlu0 %v32
    %v34 = vpop.xlane.xlu0 %33
    %v35 = vmax.f32 %v30, %v34
    %vm36 = vcmask 7168
    %37 = vst.msk [vmem:[#allocation2] sm:$0xff] %vm36, %v35
    %v38 = vld [vmem:[#allocation3] sm:$0xff]
    %v39 = vsel %vm31, %v29, 0.0
    %40 = vadd.xlane.f32.xlu0 %v39
    %v41 = vpop.xlane.xlu0 %40
    %v42 = vadd.f32 %v38, %v41
    %43 = vst.msk [vmem:[#allocation3] sm:$0xff] %vm36, %v42
    // Predicated region
    $region14: #{tpu_custom_call.1} parent=1 // pred_check
      %p44 = pneg %p22
    $region15: #{tpu_custom_call.1} parent=1 // pred_check_branch
      %46 = sbr.rel (%p44) target = $region17
    $region16: #{tpu_custom_call.1} parent=1 // pred_region
      %v47 = vld [vmem:[#allocation2] sm:$0xff]
      %48 = vst.msk [vmem:[%s1] sm:$0xff] %vm36, %v47
      %v49 = vld [vmem:[#allocation3] sm:$0xff]
      %v50 = vmul.f32 %v49, 0.0625
      %51 = vst.msk [vmem:[%s2] sm:$0xff] %vm36, %v50
    $region17: #{tpu_custom_call.1} parent=1 // pred_fallthru
      _
    // Predicated region
    $region18: #{tpu_custom_call.1} parent=1 // pred_check
      _
    $region19: #{tpu_custom_call.1} parent=1 // pred_check_branch
      %53 = sbr.rel (0) target = $region21
    $region20: #{tpu_custom_call.1} parent=1 // pred_region
      _
    $region21: #{tpu_custom_call.1} parent=1 // pred_fallthru
      _
    // Predicated region
    $region22: #{tpu_custom_call.1} parent=1 // pred_check
      _
    $region23: #{tpu_custom_call.1} parent=1 // pred_check_branch
      %55 = sbr.rel (0) target = $region25
    $region24: #{tpu_custom_call.1} parent=1 // pred_region
      _
    $region25: #{tpu_custom_call.1} parent=1 // pred_fallthru
      _
    // Predicated region
    $region26: #{tpu_custom_call.1} parent=1 // pred_check
      _
    $region27: #{tpu_custom_call.1} parent=1 // pred_check_branch
      %57 = sbr.rel (0) target = $region29
    $region28: #{tpu_custom_call.1} parent=1 // pred_region
      _
    $region29: #{tpu_custom_call.1} parent=1 // pred_fallthru
      _
    // Predicated region
    $region30: #{tpu_custom_call.1} parent=1 // pred_check
      _
    $region31: #{tpu_custom_call.1} parent=1 // pred_check_branch
      %59 = sbr.rel (0) target = $region33
    $region32: #{tpu_custom_call.1} parent=1 // pred_region
      _
    $region33: #{tpu_custom_call.1} parent=1 // pred_fallthru
      _
    %60 = vsyncpa [#allocation5], 1

</llo_original>
